<compile_context>
chip_gen: v7x
topology: tpu7x:2x2x1
jax: 0.10.0
libtpu: 0.0.40
codegen_flags: <defaults>
</compile_context>

<pallas_src>
import jax
import jax.numpy as jnp
from jax.experimental import pallas as pl
from jax.experimental.pallas import tpu as pltpu


def _round_up(x, m):
    return ((x + m - 1) // m) * m


def _fc_relu_kernel(x_ref, wt_ref, o_ref):
    # x_ref: [tm, C]   wt_ref: [C, tn]   o_ref: [tm, tn]
    o_ref[...] = jnp.maximum(
        jnp.dot(x_ref[...], wt_ref[...], preferred_element_type=jnp.float32),
        0.0,
    ).astype(o_ref.dtype)


# Keep the weight fully VMEM-resident as long as it stays under this budget
# (leaves ample room for double-buffered x / out tiles on v7x's 64 MiB VMEM).
_RESIDENT_WEIGHT_BYTES = 12 << 20


def dim_reduction_forward(x, wt, *, tm=512, tn=512):
    """y = relu(x @ wt)   (DimReduction.forward with default config).

    x:  [N, C] float32
    wt: [C, M] float32  (fc1 weight stored pre-transposed -> lane-dense output)
    returns [N, M] float32
    """
    N, C = x.shape
    C2, M = wt.shape
    assert C == C2

    itemsize = jnp.dtype(x.dtype).itemsize

    # ---- row tiling (always) -------------------------------------------------
    tm_eff = min(tm, _round_up(N, 8))
    tm_eff = _round_up(tm_eff, 8)
    n_pad = _round_up(N, tm_eff)
    x_in = jnp.pad(x, ((0, n_pad - N), (0, 0))) if n_pad != N else x

    # ---- column tiling (only if the weight is too large to stay resident) ----
    weight_resident = (C * M * itemsize) <= _RESIDENT_WEIGHT_BYTES
    if weight_resident:
        tn_eff = M
        m_pad = M
        wt_in = wt
    else:
        tn_eff = min(tn, _round_up(M, 128))
        tn_eff = _round_up(tn_eff, 128)
        m_pad = _round_up(M, tn_eff)
        wt_in = jnp.pad(wt, ((0, 0), (0, m_pad - M))) if m_pad != M else wt

    grid = (n_pad // tm_eff, m_pad // tn_eff)

    # VMEM budget: double-buffered x / weight / out tiles + slack.
    vmem_bytes = itemsize * (
        2 * tm_eff * C + (1 if weight_resident else 2) * C * tn_eff
        + 2 * tm_eff * tn_eff
    ) + (1 << 20)
    vmem_limit = int(min(max(vmem_bytes, 32 << 20), 64 << 20))

    out = pl.pallas_call(
        _fc_relu_kernel,
        out_shape=jax.ShapeDtypeStruct((n_pad, m_pad), x.dtype),
        grid_spec=pltpu.PrefetchScalarGridSpec(
            num_scalar_prefetch=0,
            grid=grid,
            in_specs=[
                # x row tile: block index constant across the inner (column)
                # axis -> not re-fetched per column tile.
                pl.BlockSpec((tm_eff, C), lambda i, j: (i, 0)),
                # weight tile: full array when resident, column-streamed else.
                pl.BlockSpec((C, tn_eff), lambda i, j: (0, j)),
            ],
            out_specs=pl.BlockSpec((tm_eff, tn_eff), lambda i, j: (i, j)),
        ),
        compiler_params=pltpu.CompilerParams(
            dimension_semantics=("parallel", "parallel"),
            vmem_limit_bytes=vmem_limit,
        ),
        cost_estimate=pl.CostEstimate(
            flops=2 * n_pad * C * m_pad,
            bytes_accessed=itemsize * (n_pad * C + C * m_pad + n_pad * m_pad),
            transcendentals=0,
        ),
    )(x_in, wt_in)

    if n_pad != N or m_pad != M:
        out = out[:N, :M]
    return out


def make_params(key, n_channels, m_dim):
    """fc1 weight: xavier_normal_ on the PyTorch [m_dim, n_channels] layout,
    stored pre-transposed as [n_channels, m_dim] for the kernel."""
    std = (2.0 / (n_channels + m_dim)) ** 0.5
    wt = std * jax.random.normal(key, (n_channels, m_dim), dtype=jnp.float32)
    return wt  # [C, M]


if __name__ == "__main__":
    # Small shapes consistent with the module: N tokens, n_channels input dim,
    # m_dim output dim (module default 512, kept small here).  N deliberately
    # not a multiple of 8 to exercise the padding path.
    N, n_channels, m_dim = 50, 64, 128

    key = jax.random.PRNGKey(0)
    kx, kw = jax.random.split(key)
    x = jax.random.normal(kx, (N, n_channels), dtype=jnp.float32)
    wt = make_params(kw, n_channels, m_dim)  # [C, M]

    y = dim_reduction_forward(x, wt)
    y = jax.block_until_ready(y)

    # pure-JAX reference check
    y_ref = jnp.maximum(x @ wt, 0.0)
    assert y.shape == (N, m_dim)
    assert jnp.allclose(y, y_ref, atol=1e-5, rtol=1e-5)

    print("KERNEL_OK")
</pallas_src>

<mosaic_0001>
module attributes {stable_mosaic.version = 11 : i64} {
  func.func @_fc_relu_kernel(%arg0: i32, %arg1: i32, %arg2: memref<56x64xf32, #tpu.memory_space<vmem>>, %arg3: memref<64x128xf32, #tpu.memory_space<vmem>>, %arg4: memref<56x128xf32, #tpu.memory_space<vmem>>) attributes {dimension_semantics = [#tpu.dimension_semantics<parallel>, #tpu.dimension_semantics<parallel>], iteration_bounds = array<i64: 1, 1>, scalar_prefetch = 0 : i64, scratch_operands = 0 : i64, tpu.core_type = #tpu.core_type<tc>, window_params = [{transform_indices = @transform_0, window_bounds = array<i64: 56, 64>}, {transform_indices = @transform_1, window_bounds = array<i64: 64, 128>}, {transform_indices = @transform_2, window_bounds = array<i64: 56, 128>}]} {
    %c0 = arith.constant 0 : index
    %c0_0 = arith.constant 0 : index
    %0 = vector.load %arg2[%c0, %c0_0] : memref<56x64xf32, #tpu.memory_space<vmem>>, vector<56x64xf32>
    %c0_1 = arith.constant 0 : index
    %c0_2 = arith.constant 0 : index
    %1 = vector.load %arg3[%c0_1, %c0_2] : memref<64x128xf32, #tpu.memory_space<vmem>>, vector<64x128xf32>
    %cst = arith.constant dense<0.000000e+00> : vector<56x128xf32>
    %2 = tpu.matmul %0, %1, %cst {dimension_numbers = #tpu.dot_dimension_numbers<[1], [0], [0], [1], [0, 0, 1, 1], [], []>} : vector<56x64xf32>, vector<64x128xf32>, vector<56x128xf32> -> vector<56x128xf32>
    %cst_3 = arith.constant 0.000000e+00 : f32
    %3 = vector.broadcast %cst_3 : f32 to vector<56x128xf32>
    %4 = arith.maximumf %2, %3 : vector<56x128xf32>
    %c0_4 = arith.constant 0 : index
    %c0_5 = arith.constant 0 : index
    %5 = vector.load %arg4[%c0_4, %c0_5] : memref<56x128xf32, #tpu.memory_space<vmem>>, vector<56x128xf32>
    tpu.vector_store %arg4[%c0_4, %c0_5], %4 {strides = array<i32>} : memref<56x128xf32, #tpu.memory_space<vmem>>, vector<56x128xf32>,
    return
  }
  func.func @transform_0(%arg0: i32, %arg1: i32) -> (i32, i32) {
    %c0_i32 = arith.constant 0 : i32
    %c0_i32_0 = arith.constant 0 : i32
    return %arg0, %c0_i32 : i32, i32
  }
  func.func @transform_1(%arg0: i32, %arg1: i32) -> (i32, i32) {
    %c0_i32 = arith.constant 0 : i32
    %c0_i32_0 = arith.constant 0 : i32
    return %c0_i32, %arg1 : i32, i32
  }
  func.func @transform_2(%arg0: i32, %arg1: i32) -> (i32, i32) {
    %c0_i32 = arith.constant 0 : i32
    return %arg0, %arg1 : i32, i32
  }
}

</mosaic_0001>

<llo_original>
// kernel: tpu_custom_call.1
$region0: #{tpu_custom_call.1}
  #allocation0 [shape = 'u32[]', space=smem, size = 0x4, offset = 0x4, fixed_abs, tag = 'smem constant byte address 0x4 - core index']
  #allocation1 [shape = 'u32[144,128]{1,0:T(1,128)}', space=vmem, size = 0x12000, scoped, tag = 'internal scratch']
  %s0 = inlined_call_operand.hbm [shape: f32[56,64], index: 0, kind: input, shape index: {}]
  %s1 = inlined_call_operand.hbm [shape: f32[64,128], index: 1, kind: input, shape index: {}]
  %s2 = inlined_call_operand.hbm [shape: f32[56,128], index: 2, kind: output, shape index: {}]
  %s3 = sld [smem:[#allocation0]]
  $region26: #{tpu_custom_call.1} parent=0
    _
  %s5 = ssub.s32 1, %s3
  %s6 = scalar_select 0, %s5, %s3
  $region1: #{tpu_custom_call.1} parent=0
    #allocation2 [shape = 'u8[28672]{0}', space=vmem, size = 0x7000, scoped, tag = 'input window, operand 0, single buffered']
    #allocation3 [shape = 's32[1]{0}', space=sflag, size = 0x4, scoped, tag = 'scoped memory for tpu_custom_call.1']
    #allocation4 [shape = 's32[1]{0}', space=sflag, size = 0x4, scoped, tag = 'scoped memory for tpu_custom_call.1']
    #allocation5 [shape = 'u8[32768]{0}', space=vmem, size = 0x8000, scoped, tag = 'input window, operand 1, single buffered']
    #allocation6 [shape = 's32[1]{0}', space=sflag, size = 0x4, scoped, tag = 'scoped memory for tpu_custom_call.1']
    #allocation7 [shape = 'u8[28672]{0}', space=vmem, size = 0x7000, scoped, tag = 'output window, operand 0, single buffered']
    %7 = vsyncpa [#allocation3], 0
    %8 = vsyncpa [#allocation6], 0
    %9 = vsyncpa [#allocation4], 0
    // Predicated region
    $region2: #{tpu_custom_call.1} parent=1 // pred_check
      _
    $region3: #{tpu_custom_call.1} parent=1 // pred_check_branch
      %11 = sbr.rel (0) target = $region5
    $region4: #{tpu_custom_call.1} parent=1 // pred_region
      %s13 = ssub.s32 896, 896
      %14 = vsyncadd [#allocation3], %s13
      %s15 = sshll.u32 [#allocation2], 4
      %s16 = int_to_ptr.vmem [resolvable:$true] %s15
      %21 = dma.hbm_to_vmem [thread:$0]  %s0, 896, %s16, [#allocation3], 128, 128, 8
    $region5: #{tpu_custom_call.1} parent=1 // pred_fallthru
      _
    // Predicated region
    $region6: #{tpu_custom_call.1} parent=1 // pred_check
      _
    $region7: #{tpu_custom_call.1} parent=1 // pred_check_branch
      %23 = sbr.rel (0) target = $region9
    $region8: #{tpu_custom_call.1} parent=1 // pred_region
      %s25 = ssub.s32 1024, 1024
      %26 = vsyncadd [#allocation6], %s25
      %s27 = sshll.u32 [#allocation5], 4
      %s28 = int_to_ptr.vmem [resolvable:$true] %s27
      %33 = dma.hbm_to_vmem [thread:$0]  %s1, 1024, %s28, [#allocation6], 128, 128, 8
    $region9: #{tpu_custom_call.1} parent=1 // pred_fallthru
      _
    // Predicated region
    $region10: #{tpu_custom_call.1} parent=1 // pred_check
      _
    $region11: #{tpu_custom_call.1} parent=1 // pred_check_branch
      %35 = sbr.rel (0) target = $region13
    $region12: #{tpu_custom_call.1} parent=1 // pred_region
      %36 = dma.done [#allocation3], 896
    $region13: #{tpu_custom_call.1} parent=1 // pred_fallthru
      _
    // Predicated region
    $region14: #{tpu_custom_call.1} parent=1 // pred_check
      _
    $region15: #{tpu_custom_call.1} parent=1 // pred_check_branch
      %38 = sbr.rel (0) target = $region17
    $region16: #{tpu_custom_call.1} parent=1 // pred_region
      %39 = dma.done [#allocation6], 1024
    $region17: #{tpu_custom_call.1} parent=1 // pred_fallthru
      _
    %v40 = vld [vmem:[#allocation2] sm:$0xff]
    %v41 = vld [vmem:[#allocation2 + $0x8] sm:$0xff]
    %v42 = vld [vmem:[#allocation2 + $0x10] sm:$0xff]
    %v43 = vld [vmem:[#allocation2 + $0x18] sm:$0xff]
    %v44 = vld [vmem:[#allocation2 + $0x20] sm:$0xff]
    %v45 = vld [vmem:[#allocation2 + $0x28] sm:$0xff]
    %v46 = vld [vmem:[#allocation2 + $0x30] sm:$0xff]
    %v47 = vld [vmem:[#allocation5] sm:$0xff]
    %v48 = vld [vmem:[#allocation5 + $0x8] sm:$0xff]
    %v49 = vld [vmem:[#allocation5 + $0x10] sm:$0xff]
    %v50 = vld [vmem:[#allocation5 + $0x18] sm:$0xff]
    %v51 = vld [vmem:[#allocation5 + $0x20] sm:$0xff]
    %v52 = vld [vmem:[#allocation5 + $0x28] sm:$0xff]
    %v53 = vld [vmem:[#allocation5 + $0x30] sm:$0xff]
    %v54 = vld [vmem:[#allocation5 + $0x38] sm:$0xff]
    %vm55 = vcmask 523264
    %v57 = vsel %vm55, %v40, 0
    %v60 = vsel %vm55, %v41, 0
    %v63 = vsel %vm55, %v42, 0
    %v66 = vsel %vm55, %v43, 0
    %v69 = vsel %vm55, %v44, 0
    %v72 = vsel %vm55, %v45, 0
    %v75 = vsel %vm55, %v46, 0
    %77 = vmatprep.subr.mxu0 0.0
    %78 = vmatpush1.msra.mxu0 %v47
    %79 = vmatprep.subr.mxu0 0.0
    %80 = vmatpush1.msra.mxu0 %v48
    %81 = vmatprep.subr.mxu0 0.0
    %82 = vmatpush1.msra.mxu0 %v49
    %83 = vmatprep.subr.mxu0 0.0
    %84 = vmatpush1.msra.mxu0 %v50
    %85 = vmatprep.subr.mxu0 0.0
    %86 = vmatpush1.msra.mxu0 %v51
    %87 = vmatprep.subr.mxu0 0.0
    %88 = vmatpush1.msra.mxu0 %v52
    %89 = vmatprep.subr.mxu0 0.0
    %90 = vmatpush1.msra.mxu0 %v53
    %91 = vmatprep.subr.mxu0 0.0
    %92 = vmatpush1.msra.mxu0 %v54
    %93 = vmatprep.subr.mxu0 0.0
    %94 = vmatpush1.msra.mxu0 0.0
    %95 = vmatprep.subr.mxu0 0.0
    %96 = vmatpush1.msra.mxu0 0.0
    %97 = vmatprep.subr.mxu0 0.0
    %98 = vmatpush1.msra.mxu0 0.0
    %99 = vmatprep.subr.mxu0 0.0
    %100 = vmatpush1.msra.mxu0 0.0
    %101 = vmatprep.subr.mxu0 0.0
    %102 = vmatpush1.msra.mxu0 0.0
    %103 = vmatprep.subr.mxu0 0.0
    %104 = vmatpush1.msra.mxu0 0.0
    %105 = vmatprep.subr.mxu0 0.0
    %106 = vmatpush1.msra.mxu0 0.0
    %107 = vmatprep.subr.mxu0 0.0
    %108 = vmatpush1.msra.mxu0 0.0
    %109 = vmatprep.subr.mxu0 0.0
    %110 = vmatpush1.msra.mxu0 0.0
    %111 = vmatprep.subr.mxu0 0.0
    %112 = vmatpush1.msra.mxu0 0.0
    %113 = vmatprep.subr.mxu0 0.0
    %114 = vmatpush1.msra.mxu0 0.0
    %115 = vmatprep.subr.mxu0 0.0
    %116 = vmatpush1.msra.mxu0 0.0
    %117 = vmatprep.subr.mxu0 0.0
    %118 = vmatpush1.msra.mxu0 0.0
    %119 = vmatprep.subr.mxu0 0.0
    %120 = vmatpush1.msra.mxu0 0.0
    %121 = vmatprep.subr.mxu0 0.0
    %122 = vmatpush1.msra.mxu0 0.0
    %123 = vmatprep.subr.mxu0 0.0
    %124 = vmatpush1.msra.mxu0 0.0
    %125 = vmatprep.subr.mxu0 0.0
    %126 = vmatpush1.msra.mxu0 0.0
    %127 = vmatprep.subr.mxu0 0.0
    %128 = vmatpush1.msra.mxu0 0.0
    %129 = vmatprep.subr.mxu0 0.0
    %130 = vmatpush1.msra.mxu0 0.0
    %131 = vmatprep.subr.mxu0 0.0
    %132 = vmatpush1.msra.mxu0 0.0
    %133 = vmatprep.subr.mxu0 0.0
    %134 = vmatpush1.msra.mxu0 0.0
    %135 = vmatprep.subr.mxu0 0.0
    %136 = vmatpush1.msra.mxu0 0.0
    %137 = vmatprep.subr.mxu0 0.0
    %138 = vmatpush1.msra.mxu0 0.0
    %139 = vmatprep.subr.mxu0 0.0
    %140 = vmatpush1.msra.mxu0 0.0
    %141 = vmatprep.mubr.f32.mxu0 0.0
    %142 = vmatmul.mubr.f32.gmra.mrb[0].mxu0 %v57
    %v143 = vpop.f32.mrb[0].mxu0
    %v144 = vadd.f32 0.0, %v143
    %v145 = vpop.f32.mrb[0].mxu0
    %146 = vmatprep.mubr.f32.mxu0 0.0
    %147 = vmatmul.mubr.f32.gmra.mrb[0].mxu0 %v60
    %v148 = vpop.f32.mrb[0].mxu0
    %v149 = vadd.f32 0.0, %v148
    %v150 = vpop.f32.mrb[0].mxu0
    %151 = vmatprep.mubr.f32.mxu0 0.0
    %152 = vmatmul.mubr.f32.gmra.mrb[0].mxu0 %v63
    %v153 = vpop.f32.mrb[0].mxu0
    %v154 = vadd.f32 0.0, %v153
    %v155 = vpop.f32.mrb[0].mxu0
    %156 = vmatprep.mubr.f32.mxu0 0.0
    %157 = vmatmul.mubr.f32.gmra.mrb[0].mxu0 %v66
    %v158 = vpop.f32.mrb[0].mxu0
    %v159 = vadd.f32 0.0, %v158
    %v160 = vpop.f32.mrb[0].mxu0
    %161 = vmatprep.mubr.f32.mxu0 0.0
    %162 = vmatmul.mubr.f32.gmra.mrb[0].mxu0 %v69
    %v163 = vpop.f32.mrb[0].mxu0
    %v164 = vadd.f32 0.0, %v163
    %v165 = vpop.f32.mrb[0].mxu0
    %166 = vmatprep.mubr.f32.mxu0 0.0
    %167 = vmatmul.mubr.f32.gmra.mrb[0].mxu0 %v72
    %v168 = vpop.f32.mrb[0].mxu0
    %v169 = vadd.f32 0.0, %v168
    %v170 = vpop.f32.mrb[0].mxu0
    %171 = vmatprep.mubr.f32.mxu0 0.0
    %172 = vmatmul.mubr.f32.gmra.mrb[0].mxu0 %v75
    %v173 = vpop.f32.mrb[0].mxu0
    %v174 = vadd.f32 0.0, %v173
    %v175 = vpop.f32.mrb[0].mxu0
    %176 = vdwg.mxu0
    %v177 = vmax.f32 %v144, 0.0
    %v178 = vmax.f32 %v149, 0.0
    %v179 = vmax.f32 %v154, 0.0
    %v180 = vmax.f32 %v159, 0.0
    %v181 = vmax.f32 %v164, 0.0
    %v182 = vmax.f32 %v169, 0.0
    %v183 = vmax.f32 %v174, 0.0
    %184 = vst [vmem:[#allocation7] sm:$0xff] %v177
    %185 = vst [vmem:[#allocation7 + $0x8] sm:$0xff] %v178
    %186 = vst [vmem:[#allocation7 + $0x10] sm:$0xff] %v179
    %187 = vst [vmem:[#allocation7 + $0x18] sm:$0xff] %v180
    %188 = vst [vmem:[#allocation7 + $0x20] sm:$0xff] %v181
    %189 = vst [vmem:[#allocation7 + $0x28] sm:$0xff] %v182
    %190 = vst [vmem:[#allocation7 + $0x30] sm:$0xff] %v183
    // Predicated region
    $region18: #{tpu_custom_call.1} parent=1 // pred_check
      _
    $region19: #{tpu_custom_call.1} parent=1 // pred_check_branch
      %192 = sbr.rel (0) target = $region21
    $region20: #{tpu_custom_call.1} parent=1 // pred_region
      %s194 = ssub.s32 896, 896
      %195 = vsyncadd [#allocation4], %s194
      %s196 = sshll.u32 [#allocation7], 4
      %s197 = int_to_ptr.vmem [resolvable:$true] %s196
      %202 = dma.vmem_to_hbm [thread:$0]  %s197, 896, %s2, [#allocation4], 128, 128, 8
    $region21: #{tpu_custom_call.1} parent=1 // pred_fallthru
      _
    // Predicated region
    $region22: #{tpu_custom_call.1} parent=1 // pred_check
      _
    $region23: #{tpu_custom_call.1} parent=1 // pred_check_branch
      %204 = sbr.rel (0) target = $region25
    $region24: #{tpu_custom_call.1} parent=1 // pred_region
      %205 = dma.done [#allocation4], 896
    $region25: #{tpu_custom_call.1} parent=1 // pred_fallthru
      _
    %206 = vsyncpa [#allocation3], 1
    %207 = vsyncpa [#allocation6], 1
    %208 = vsyncpa [#allocation4], 1

</llo_original>
